<compile_context>
chip_gen: v5e
topology: v5e:2x2
jax: 0.10.0
libtpu: 0.0.40
codegen_flags: <defaults>
</compile_context>

<pallas_src>
import functools

import jax
import jax.numpy as jnp
from jax import lax
from jax.experimental import pallas as pl
from jax.experimental.pallas import tpu as pltpu


_CHUNK = 512  # rows per inner sub-tile (bounds h1/h2 vreg live ranges)


def _round_up(x, m):
    return (x + m - 1) // m * m


def _device_kind():
    try:
        return jax.devices()[0].device_kind.lower()
    except Exception:  # pragma: no cover - defensive
        return ""


def _num_tensorcores():
    kind = _device_kind()
    # Megacore parts: v4 / v5p (2 TC behind one device) and v7x (2 TC / chip).
    if ("v4" in kind) or ("v5p" in kind) or ("7" in kind):
        return 2
    return 1


def _default_compute_dtype():
    kind = _device_kind()
    # v5e MXU is bf16/int native; f32 operands cost extra MXU passes.
    if ("v5e" in kind) or ("v5 lite" in kind) or ("v5lite" in kind):
        return jnp.bfloat16
    return jnp.float32


def _mlp_kernel(x_ref, w1_ref, b1_ref, w2_ref, b2_ref, w3_ref, b3_ref, o_ref,
                *, chunk, tanh_dtype):
    # Weights/biases are VMEM-resident (constant index_map); load them once per
    # grid step, already in their final compute dtype (pre-cast in the wrapper).
    w1 = w1_ref[...]
    w2 = w2_ref[...]
    w3 = w3_ref[...]
    b1 = b1_ref[...]
    b2 = b2_ref[...]
    b3 = b3_ref[...]
    cdt = w1.dtype  # matmul operand dtype (f32 or bf16)

    def chunk_fwd(row):
        x = x_ref[pl.ds(row, chunk), :]
        h1 = jnp.dot(x, w1, preferred_element_type=jnp.float32) + b1
        h1 = jnp.tanh(h1.astype(tanh_dtype)).astype(cdt)
        h2 = jnp.dot(h1, w2, preferred_element_type=jnp.float32) + b2
        h2 = jnp.tanh(h2.astype(tanh_dtype)).astype(cdt)
        out = jnp.dot(h2, w3, preferred_element_type=jnp.float32) + b3
        o_ref[pl.ds(row, chunk), :] = out.astype(o_ref.dtype)

    n_chunks = x_ref.shape[0] // chunk
    if n_chunks == 1:
        chunk_fwd(0)
    else:
        def body(c, carry):
            chunk_fwd(pl.multiple_of(c * chunk, chunk))
            return carry

        lax.fori_loop(0, n_chunks, body, None, unroll=True)


@functools.partial(jax.jit, static_argnames=("tile_b", "compute_dtype",
                                              "tanh_dtype"))
def ppo_actor_forward(x, w1, b1, w2, b2, w3, b3, *, tile_b=2048,
                      compute_dtype=None, tanh_dtype=jnp.float32):
    """x: (B, input_dim) float32 -> (B, output_dim) float32."""
    batch, in_dim = x.shape
    hidden = w1.shape[1]
    out_dim = w3.shape[1]
    out_pad = _round_up(out_dim, 128)  # lane-dense output block

    cdt = _default_compute_dtype() if compute_dtype is None else compute_dtype
    num_cores = _num_tensorcores()

    # ---- Batch-tile sizing -------------------------------------------------
    padded8 = _round_up(batch, 8)
    tb = min(_round_up(int(tile_b), 8), padded8)
    if tb > _CHUNK:
        tb = _round_up(tb, _CHUNK)          # keep big tiles chunk-aligned
    if num_cores > 1:
        # Ensure >= num_cores grid steps when the batch allows it so the
        # "parallel" batch axis can actually be sharded across TensorCores.
        cap = _round_up(pl.cdiv(padded8, num_cores), 8)
        if cap > _CHUNK:
            cap = _round_up(cap, _CHUNK)
        tb = min(tb, max(cap, 8))
    tb = max(tb, 8)
    padded = _round_up(batch, tb)
    chunk = tb if tb <= _CHUNK else _CHUNK
    grid = (padded // tb,)

    if padded != batch:
        x = jnp.pad(x, ((0, padded - batch), (0, 0)))

    # ---- Lane-dense final layer (pad output columns to 128) ----------------
    if out_pad != out_dim:
        w3 = jnp.pad(w3, ((0, 0), (0, out_pad - out_dim)))
        b3 = jnp.pad(b3, ((0, 0), (0, out_pad - out_dim)))

    # ---- Pre-cast matmul operands once (NOT per grid step in the kernel) ---
    # Note: when cdt is bf16 the observations x also go to bf16; accumulation
    # stays f32 and biases/tanh stay f32.
    x = x.astype(cdt)
    w1c, w2c, w3c = w1.astype(cdt), w2.astype(cdt), w3.astype(cdt)
    b1c, b2c, b3c = (b1.astype(jnp.float32), b2.astype(jnp.float32),
                     b3.astype(jnp.float32))

    act_spec = pl.BlockSpec((tb, in_dim), lambda i: (i, 0))
    out_spec = pl.BlockSpec((tb, out_pad), lambda i: (i, 0))

    def resident(arr):
        # Full-array block, constant index_map -> stays resident in VMEM
        # across all grid steps (no per-step re-DMA of the tiny weights).
        return pl.BlockSpec(arr.shape, lambda i: (0, 0))

    wbytes = (w1c.size * w1c.dtype.itemsize + w2c.size * w2c.dtype.itemsize
              + w3c.size * w3c.dtype.itemsize
              + b1c.size * 4 + b2c.size * 4 + b3c.size * 4)
    cost = pl.CostEstimate(
        flops=2 * padded * (in_dim * hidden + hidden * hidden
                            + hidden * out_pad),
        transcendentals=2 * padded * hidden,
        bytes_accessed=(padded * in_dim * x.dtype.itemsize
                        + padded * out_pad * 4 + wbytes),
    )

    out = pl.pallas_call(
        functools.partial(_mlp_kernel, chunk=chunk, tanh_dtype=tanh_dtype),
        out_shape=jax.ShapeDtypeStruct((padded, out_pad), jnp.float32),
        grid=grid,
        in_specs=[
            act_spec,
            resident(w1c), resident(b1c),
            resident(w2c), resident(b2c),
            resident(w3c), resident(b3c),
        ],
        out_specs=out_spec,
        compiler_params=pltpu.CompilerParams(
            dimension_semantics=("parallel",),
            vmem_limit_bytes=48 * 1024 * 1024,  # guardrail (v5e scoped=16MiB)
        ),
        cost_estimate=cost,
    )(x, w1c, b1c, w2c, b2c, w3c, b3c)

    return out[:batch, :out_dim]


def _init_linear(key, fan_in, fan_out):
    """PyTorch nn.Linear default init (uniform +/- 1/sqrt(fan_in)).

    Returns W as (fan_in, fan_out) (transposed vs. PyTorch) and b as (1, fan_out).
    """
    kw, kb = jax.random.split(key)
    bound = 1.0 / jnp.sqrt(fan_in)
    w = jax.random.uniform(kw, (fan_in, fan_out), jnp.float32, -bound, bound)
    b = jax.random.uniform(kb, (1, fan_out), jnp.float32, -bound, bound)
    return w, b


def _reference_forward(x, w1, b1, w2, b2, w3, b3):
    h1 = jnp.tanh(x @ w1 + b1)
    h2 = jnp.tanh(h1 @ w2 + b2)
    return h2 @ w3 + b3


if __name__ == "__main__":
    input_dim, hidden_dim, output_dim = 4, 128, 2

    key = jax.random.PRNGKey(0)
    k1, k2, k3, kx1, kx2, kx3 = jax.random.split(key, 6)

    w1, b1 = _init_linear(k1, input_dim, hidden_dim)
    w2, b2 = _init_linear(k2, hidden_dim, hidden_dim)
    w3, b3 = _init_linear(k3, hidden_dim, output_dim)

    # 1) Small batch, f32 compute, single grid step / single chunk, tight tol.
    x = jax.random.normal(kx1, (8, input_dim), jnp.float32)
    out = jax.block_until_ready(
        ppo_actor_forward(x, w1, b1, w2, b2, w3, b3,
                          compute_dtype=jnp.float32))
    ref = _reference_forward(x, w1, b1, w2, b2, w3, b3)
    assert out.shape == (8, output_dim)
    assert jnp.allclose(out, ref, atol=1e-5, rtol=1e-5), "f32 mismatch (small)"

    # 2) Larger batch at default tile_b: exercises the inner chunked fori_loop
    #    (and the >=2-step grid split on megacore parts), still f32 / tight tol.
    x2 = jax.random.normal(kx2, (1280, input_dim), jnp.float32)
    out2 = jax.block_until_ready(
        ppo_actor_forward(x2, w1, b1, w2, b2, w3, b3,
                          compute_dtype=jnp.float32))
    ref2 = _reference_forward(x2, w1, b1, w2, b2, w3, b3)
    assert out2.shape == (1280, output_dim)
    assert jnp.allclose(out2, ref2, atol=1e-5, rtol=1e-5), "f32 mismatch (big)"

    # 3) Ragged batch exercising padding + multi-step grid with the bf16
    #    matmul fast path (f32 accumulation), looser tolerance.
    x3 = jax.random.normal(kx3, (200, input_dim), jnp.float32)
    out3 = jax.block_until_ready(
        ppo_actor_forward(x3, w1, b1, w2, b2, w3, b3,
                          tile_b=64, compute_dtype=jnp.bfloat16))
    ref3 = _reference_forward(x3, w1, b1, w2, b2, w3, b3)
    assert out3.shape == (200, output_dim)
    assert jnp.allclose(out3, ref3, atol=5e-2, rtol=5e-2), "bf16 mismatch"

    print("KERNEL_OK")
</pallas_src>

<mosaic_0001>
module attributes {stable_mosaic.version = 11 : i64} {
  func.func @_mlp_kernel(%arg0: i32, %arg1: memref<8x4xf32, #tpu.memory_space<vmem>>, %arg2: memref<4x128xf32, #tpu.memory_space<vmem>>, %arg3: memref<1x128xf32, #tpu.memory_space<vmem>>, %arg4: memref<128x128xf32, #tpu.memory_space<vmem>>, %arg5: memref<1x128xf32, #tpu.memory_space<vmem>>, %arg6: memref<128x128xf32, #tpu.memory_space<vmem>>, %arg7: memref<1x128xf32, #tpu.memory_space<vmem>>, %arg8: memref<8x128xf32, #tpu.memory_space<vmem>>) attributes {dimension_semantics = [#tpu.dimension_semantics<parallel>], iteration_bounds = array<i64: 1>, scalar_prefetch = 0 : i64, scratch_operands = 0 : i64, tpu.core_type = #tpu.core_type<tc>, window_params = [{transform_indices = @transform_0, window_bounds = array<i64: 8, 4>}, {pipeline_mode = #tpu.pipeline_mode<synchronous>, transform_indices = @transform_1, window_bounds = array<i64: 4, 128>}, {pipeline_mode = #tpu.pipeline_mode<synchronous>, transform_indices = @transform_2, window_bounds = array<i64: 1, 128>}, {pipeline_mode = #tpu.pipeline_mode<synchronous>, transform_indices = @transform_3, window_bounds = array<i64: 128, 128>}, {pipeline_mode = #tpu.pipeline_mode<synchronous>, transform_indices = @transform_4, window_bounds = array<i64: 1, 128>}, {pipeline_mode = #tpu.pipeline_mode<synchronous>, transform_indices = @transform_5, window_bounds = array<i64: 128, 128>}, {pipeline_mode = #tpu.pipeline_mode<synchronous>, transform_indices = @transform_6, window_bounds = array<i64: 1, 128>}, {transform_indices = @transform_7, window_bounds = array<i64: 8, 128>}]} {
    %c0 = arith.constant 0 : index
    %c0_0 = arith.constant 0 : index
    %0 = vector.load %arg2[%c0, %c0_0] : memref<4x128xf32, #tpu.memory_space<vmem>>, vector<4x128xf32>
    %c0_1 = arith.constant 0 : index
    %c0_2 = arith.constant 0 : index
    %1 = vector.load %arg4[%c0_1, %c0_2] : memref<128x128xf32, #tpu.memory_space<vmem>>, vector<128x128xf32>
    %c0_3 = arith.constant 0 : index
    %c0_4 = arith.constant 0 : index
    %2 = vector.load %arg6[%c0_3, %c0_4] : memref<128x128xf32, #tpu.memory_space<vmem>>, vector<128x128xf32>
    %c0_5 = arith.constant 0 : index
    %c0_6 = arith.constant 0 : index
    %3 = vector.load %arg3[%c0_5, %c0_6] : memref<1x128xf32, #tpu.memory_space<vmem>>, vector<1x128xf32>
    %c0_7 = arith.constant 0 : index
    %c0_8 = arith.constant 0 : index
    %4 = vector.load %arg5[%c0_7, %c0_8] : memref<1x128xf32, #tpu.memory_space<vmem>>, vector<1x128xf32>
    %c0_9 = arith.constant 0 : index
    %c0_10 = arith.constant 0 : index
    %5 = vector.load %arg7[%c0_9, %c0_10] : memref<1x128xf32, #tpu.memory_space<vmem>>, vector<1x128xf32>
    %c0_11 = arith.constant 0 : index
    %c0_12 = arith.constant 0 : index
    %6 = vector.load %arg1[%c0_11, %c0_12] : memref<8x4xf32, #tpu.memory_space<vmem>>, vector<8x4xf32>
    %cst = arith.constant dense<0.000000e+00> : vector<8x128xf32>
    %7 = tpu.matmul %6, %0, %cst {dimension_numbers = #tpu.dot_dimension_numbers<[1], [0], [0], [1], [0, 0, 1, 1], [], []>} : vector<8x4xf32>, vector<4x128xf32>, vector<8x128xf32> -> vector<8x128xf32>
    %8 = vector.broadcast %3 : vector<1x128xf32> to vector<8x128xf32>
    %9 = arith.addf %7, %8 : vector<8x128xf32>
    %10 = math.tanh %9 : vector<8x128xf32>
    %cst_13 = arith.constant dense<0.000000e+00> : vector<8x128xf32>
    %11 = tpu.matmul %10, %1, %cst_13 {dimension_numbers = #tpu.dot_dimension_numbers<[1], [0], [0], [1], [0, 0, 1, 1], [], []>} : vector<8x128xf32>, vector<128x128xf32>, vector<8x128xf32> -> vector<8x128xf32>
    %12 = vector.broadcast %4 : vector<1x128xf32> to vector<8x128xf32>
    %13 = arith.addf %11, %12 : vector<8x128xf32>
    %14 = math.tanh %13 : vector<8x128xf32>
    %cst_14 = arith.constant dense<0.000000e+00> : vector<8x128xf32>
    %15 = tpu.matmul %14, %2, %cst_14 {dimension_numbers = #tpu.dot_dimension_numbers<[1], [0], [0], [1], [0, 0, 1, 1], [], []>} : vector<8x128xf32>, vector<128x128xf32>, vector<8x128xf32> -> vector<8x128xf32>
    %16 = vector.broadcast %5 : vector<1x128xf32> to vector<8x128xf32>
    %17 = arith.addf %15, %16 : vector<8x128xf32>
    %c0_15 = arith.constant 0 : index
    %c0_16 = arith.constant 0 : index
    %18 = vector.load %arg8[%c0_15, %c0_16] : memref<8x128xf32, #tpu.memory_space<vmem>>, vector<8x128xf32>
    tpu.vector_store %arg8[%c0_15, %c0_16], %17 {strides = array<i32>} : memref<8x128xf32, #tpu.memory_space<vmem>>, vector<8x128xf32>,
    return
  }
  func.func @transform_0(%arg0: i32) -> (i32, i32) {
    %c0_i32 = arith.constant 0 : i32
    %c0_i32_0 = arith.constant 0 : i32
    return %arg0, %c0_i32 : i32, i32
  }
  func.func @transform_1(%arg0: i32) -> (i32, i32) {
    %c0_i32 = arith.constant 0 : i32
    %c0_i32_0 = arith.constant 0 : i32
    %c0_i32_1 = arith.constant 0 : i32
    return %c0_i32, %c0_i32_0 : i32, i32
  }
  func.func @transform_2(%arg0: i32) -> (i32, i32) {
    %c0_i32 = arith.constant 0 : i32
    %c0_i32_0 = arith.constant 0 : i32
    %c0_i32_1 = arith.constant 0 : i32
    return %c0_i32, %c0_i32_0 : i32, i32
  }
  func.func @transform_3(%arg0: i32) -> (i32, i32) {
    %c0_i32 = arith.constant 0 : i32
    %c0_i32_0 = arith.constant 0 : i32
    %c0_i32_1 = arith.constant 0 : i32
    return %c0_i32, %c0_i32_0 : i32, i32
  }
  func.func @transform_4(%arg0: i32) -> (i32, i32) {
    %c0_i32 = arith.constant 0 : i32
    %c0_i32_0 = arith.constant 0 : i32
    %c0_i32_1 = arith.constant 0 : i32
    return %c0_i32, %c0_i32_0 : i32, i32
  }
  func.func @transform_5(%arg0: i32) -> (i32, i32) {
    %c0_i32 = arith.constant 0 : i32
    %c0_i32_0 = arith.constant 0 : i32
    %c0_i32_1 = arith.constant 0 : i32
    return %c0_i32, %c0_i32_0 : i32, i32
  }
  func.func @transform_6(%arg0: i32) -> (i32, i32) {
    %c0_i32 = arith.constant 0 : i32
    %c0_i32_0 = arith.constant 0 : i32
    %c0_i32_1 = arith.constant 0 : i32
    return %c0_i32, %c0_i32_0 : i32, i32
  }
  func.func @transform_7(%arg0: i32) -> (i32, i32) {
    %c0_i32 = arith.constant 0 : i32
    %c0_i32_0 = arith.constant 0 : i32
    return %arg0, %c0_i32 : i32, i32
  }
}

</mosaic_0001>

<llo_original>
// kernel: ppo_actor_forward.1
$region0: #{ppo_actor_forward.1}
  #allocation0 [shape = 'u32[]', space=smem, size = 0x4, offset = 0x4, fixed_abs, tag = 'smem constant byte address 0x4 - core index']
  #allocation1 [shape = 'u32[72,128]{1,0:T(1,128)}', space=vmem, size = 0x9000, scoped, tag = 'internal scratch']
  %s0 = inlined_call_operand.vmem [shape: f32[8,4], index: 0, kind: input, shape index: {}]
  %s1 = inlined_call_operand.vmem [shape: f32[4,128], index: 1, kind: input, shape index: {}]
  %s2 = inlined_call_operand.vmem [shape: f32[1,128], index: 2, kind: input, shape index: {}]
  %s3 = inlined_call_operand.vmem [shape: f32[128,128], index: 3, kind: input, shape index: {}]
  %s4 = inlined_call_operand.vmem [shape: f32[1,128], index: 4, kind: input, shape index: {}]
  %s5 = inlined_call_operand.vmem [shape: f32[128,128], index: 5, kind: input, shape index: {}]
  %s6 = inlined_call_operand.vmem [shape: f32[1,128], index: 6, kind: input, shape index: {}]
  %s7 = inlined_call_operand.vmem [shape: f32[8,128], index: 7, kind: output, shape index: {}]
  %s8 = sld [smem:[#allocation0]]
  $region38: #{ppo_actor_forward.1} parent=0
    _
  %s10 = ssub.s32 1, %s8
  %s11 = scalar_select 0, %s10, %s8
  // Predicated region
  $region2: #{ppo_actor_forward.1} parent=0 // pred_check
    _
  $region3: #{ppo_actor_forward.1} parent=0 // pred_check_branch
    %13 = sbr.rel (0) target = $region5
  $region4: #{ppo_actor_forward.1} parent=0 // pred_region
    _
  $region5: #{ppo_actor_forward.1} parent=0 // pred_fallthru
    _
  // Predicated region
  $region6: #{ppo_actor_forward.1} parent=0 // pred_check
    _
  $region7: #{ppo_actor_forward.1} parent=0 // pred_check_branch
    %15 = sbr.rel (0) target = $region9
  $region8: #{ppo_actor_forward.1} parent=0 // pred_region
    _
  $region9: #{ppo_actor_forward.1} parent=0 // pred_fallthru
    _
  // Predicated region
  $region10: #{ppo_actor_forward.1} parent=0 // pred_check
    _
  $region11: #{ppo_actor_forward.1} parent=0 // pred_check_branch
    %17 = sbr.rel (0) target = $region13
  $region12: #{ppo_actor_forward.1} parent=0 // pred_region
    _
  $region13: #{ppo_actor_forward.1} parent=0 // pred_fallthru
    _
  // Predicated region
  $region14: #{ppo_actor_forward.1} parent=0 // pred_check
    _
  $region15: #{ppo_actor_forward.1} parent=0 // pred_check_branch
    %19 = sbr.rel (0) target = $region17
  $region16: #{ppo_actor_forward.1} parent=0 // pred_region
    _
  $region17: #{ppo_actor_forward.1} parent=0 // pred_fallthru
    _
  // Predicated region
  $region18: #{ppo_actor_forward.1} parent=0 // pred_check
    _
  $region19: #{ppo_actor_forward.1} parent=0 // pred_check_branch
    %21 = sbr.rel (0) target = $region21
  $region20: #{ppo_actor_forward.1} parent=0 // pred_region
    _
  $region21: #{ppo_actor_forward.1} parent=0 // pred_fallthru
    _
  // Predicated region
  $region22: #{ppo_actor_forward.1} parent=0 // pred_check
    _
  $region23: #{ppo_actor_forward.1} parent=0 // pred_check_branch
    %23 = sbr.rel (0) target = $region25
  $region24: #{ppo_actor_forward.1} parent=0 // pred_region
    _
  $region25: #{ppo_actor_forward.1} parent=0 // pred_fallthru
    _
  // Predicated region
  $region26: #{ppo_actor_forward.1} parent=0 // pred_check
    _
  $region27: #{ppo_actor_forward.1} parent=0 // pred_check_branch
    %25 = sbr.rel (0) target = $region29
  $region28: #{ppo_actor_forward.1} parent=0 // pred_region
    _
  $region29: #{ppo_actor_forward.1} parent=0 // pred_fallthru
    _
  %v26 = vld [vmem:[%s1] sm:$0xf]
  %v27 = vld [vmem:[%s3] sm:$0xff]
  %v28 = vld [vmem:[%s3 + $0x8] sm:$0xff]
  %v29 = vld [vmem:[%s3 + $0x10] sm:$0xff]
  %v30 = vld [vmem:[%s3 + $0x18] sm:$0xff]
  %v31 = vld [vmem:[%s3 + $0x20] sm:$0xff]
  %v32 = vld [vmem:[%s3 + $0x28] sm:$0xff]
  %v33 = vld [vmem:[%s3 + $0x30] sm:$0xff]
  %v34 = vld [vmem:[%s3 + $0x38] sm:$0xff]
  %v35 = vld [vmem:[%s3 + $0x40] sm:$0xff]
  %v36 = vld [vmem:[%s3 + $0x48] sm:$0xff]
  %v37 = vld [vmem:[%s3 + $0x50] sm:$0xff]
  %v38 = vld [vmem:[%s3 + $0x58] sm:$0xff]
  %v39 = vld [vmem:[%s3 + $0x60] sm:$0xff]
  %v40 = vld [vmem:[%s3 + $0x68] sm:$0xff]
  %v41 = vld [vmem:[%s3 + $0x70] sm:$0xff]
  %v42 = vld [vmem:[%s3 + $0x78] sm:$0xff]
  %v43 = vld [vmem:[%s5] sm:$0xff]
  %v44 = vld [vmem:[%s5 + $0x8] sm:$0xff]
  %v45 = vld [vmem:[%s5 + $0x10] sm:$0xff]
  %v46 = vld [vmem:[%s5 + $0x18] sm:$0xff]
  %v47 = vld [vmem:[%s5 + $0x20] sm:$0xff]
  %v48 = vld [vmem:[%s5 + $0x28] sm:$0xff]
  %v49 = vld [vmem:[%s5 + $0x30] sm:$0xff]
  %v50 = vld [vmem:[%s5 + $0x38] sm:$0xff]
  %v51 = vld [vmem:[%s5 + $0x40] sm:$0xff]
  %v52 = vld [vmem:[%s5 + $0x48] sm:$0xff]
  %v53 = vld [vmem:[%s5 + $0x50] sm:$0xff]
  %v54 = vld [vmem:[%s5 + $0x58] sm:$0xff]
  %v55 = vld [vmem:[%s5 + $0x60] sm:$0xff]
  %v56 = vld [vmem:[%s5 + $0x68] sm:$0xff]
  %v57 = vld [vmem:[%s5 + $0x70] sm:$0xff]
  %v58 = vld [vmem:[%s5 + $0x78] sm:$0xff]
  %v59 = vld [vmem:[%s2] sm:$0x1]
  %v60 = vld [vmem:[%s4] sm:$0x1]
  %v61 = vld [vmem:[%s6] sm:$0x1]
  %v62 = vld [vmem:[%s0] sm:$0xff]
  %v64 = vperm.slane %v59, 0
  %vm66 = vcmask 31744
  %v68 = vsel %vm66, %v62, 0
  %vm70 = vcmask 1043456
  %v72 = vsel %vm70, %v26, 0
  %74 = vmatpush.msra.mxu0 0.0
  %75 = vmatpush.msra.mxu0 0.0
  %76 = vmatpush.msra.mxu0 0.0
  %77 = vmatpush.msra.mxu0 0.0
  %78 = vmatpush.msra.mxu0 0.0
  %79 = vmatpush.msra.mxu0 0.0
  %80 = vmatpush.msra.mxu0 0.0
  %81 = vmatpush.msra.mxu0 0.0
  %82 = vmatpush.msra.mxu0 0.0
  %83 = vmatpush.msra.mxu0 0.0
  %84 = vmatpush.msra.mxu0 0.0
  %85 = vmatpush.msra.mxu0 0.0
  %86 = vmatpush.msra.mxu0 0.0
  %87 = vmatpush.msra.mxu0 0.0
  %88 = vmatpush.msra.mxu0 0.0
  %89 = vmatpush.msra.mxu0 %v72
  %90 = vmatmul.f32.gmra.mxu0 %v68
  %v91 = vpop.f32.mrf.mxu0
  %v92 = vadd.f32 %v64, %v91
  %93 = vdwg.mxu0
  %v94 = vtanh.pop %v92
  %v96 = vperm.slane %v60, 0
  %98 = vmatpush.msra.mxu0 %v42
  %99 = vmatpush.msra.mxu0 %v41
  %100 = vmatpush.msra.mxu0 %v40
  %101 = vmatpush.msra.mxu0 %v39
  %102 = vmatpush.msra.mxu0 %v38
  %103 = vmatpush.msra.mxu0 %v37
  %104 = vmatpush.msra.mxu0 %v36
  %105 = vmatpush.msra.mxu0 %v35
  %106 = vmatpush.msra.mxu0 %v34
  %107 = vmatpush.msra.mxu0 %v33
  %108 = vmatpush.msra.mxu0 %v32
  %109 = vmatpush.msra.mxu0 %v31
  %110 = vmatpush.msra.mxu0 %v30
  %111 = vmatpush.msra.mxu0 %v29
  %112 = vmatpush.msra.mxu0 %v28
  %113 = vmatpush.msra.mxu0 %v27
  %114 = vmatmul.f32.gmra.mxu0 %v94
  %v115 = vpop.f32.mrf.mxu0
  %v116 = vadd.f32 %v96, %v115
  %117 = vdwg.mxu0
  %v118 = vtanh.pop %v116
  %v120 = vperm.slane %v61, 0
  %122 = vmatpush.msra.mxu0 %v58
  %123 = vmatpush.msra.mxu0 %v57
  %124 = vmatpush.msra.mxu0 %v56
  %125 = vmatpush.msra.mxu0 %v55
  %126 = vmatpush.msra.mxu0 %v54
  %127 = vmatpush.msra.mxu0 %v53
  %128 = vmatpush.msra.mxu0 %v52
  %129 = vmatpush.msra.mxu0 %v51
  %130 = vmatpush.msra.mxu0 %v50
  %131 = vmatpush.msra.mxu0 %v49
  %132 = vmatpush.msra.mxu0 %v48
  %133 = vmatpush.msra.mxu0 %v47
  %134 = vmatpush.msra.mxu0 %v46
  %135 = vmatpush.msra.mxu0 %v45
  %136 = vmatpush.msra.mxu0 %v44
  %137 = vmatpush.msra.mxu0 %v43
  %138 = vmatmul.f32.gmra.mxu0 %v118
  %v139 = vpop.f32.mrf.mxu0
  %v140 = vadd.f32 %v120, %v139
  %141 = vdwg.mxu0
  %142 = vst [vmem:[%s7] sm:$0xff] %v140
  // Predicated region
  $region30: #{ppo_actor_forward.1} parent=0 // pred_check
    _
  $region31: #{ppo_actor_forward.1} parent=0 // pred_check_branch
    %144 = sbr.rel (0) target = $region33
  $region32: #{ppo_actor_forward.1} parent=0 // pred_region
    _
  $region33: #{ppo_actor_forward.1} parent=0 // pred_fallthru
    _
  // Predicated region
  $region34: #{ppo_actor_forward.1} parent=0 // pred_check
    _
  $region35: #{ppo_actor_forward.1} parent=0 // pred_check_branch
    %146 = sbr.rel (0) target = $region37
  $region36: #{ppo_actor_forward.1} parent=0 // pred_region
    _
  $region37: #{ppo_actor_forward.1} parent=0 // pred_fallthru
    _

</llo_original>
